<compile_context>
chip_gen: v5e
topology: v5e:2x2
jax: 0.10.0
libtpu: 0.0.40
codegen_flags: <defaults>
</compile_context>

<pallas_src>
import functools

import jax
import jax.numpy as jnp
from jax.experimental import pallas as pl
from jax.experimental.pallas import tpu as pltpu


def _pick_bn(n, target=8):
    """Largest divisor of n (<= target) that still leaves >= 2 grid steps."""
    best = 1
    for d in range(1, min(n, target) + 1):
        if n % d == 0 and n // d >= 2:
            best = d
    return best


def _mfm_conv_kernel(x_ref, w_ref, b_ref, o_ref, slab_ref, *, kh, kw, pad, W):
    # x_ref   : (bn, Cin, F)        flat, H-padded + halo-padded input rows
    # w_ref   : (2*Cout, kh*kw*Cin) folded conv weights
    # b_ref   : (2*Cout, 1)         bias column
    # o_ref   : (bn, Cout, H*W)     channel-major output, spatial flat on lanes
    # slab_ref: (kh*kw*Cin, bn*H*W) im2col slab (VMEM scratch)
    bn = x_ref.shape[0]
    cin = x_ref.shape[1]
    cout = o_ref.shape[1]
    HW = o_ref.shape[2]

    # w-index (column within a row) of every flattened output position (lanes).
    wcol = jax.lax.broadcasted_iota(jnp.int32, (1, HW), 1) % W

    # ---- build the im2col slab: rows = (tap, cin), cols = (batch, h*W + w) ----
    tap = 0
    for dy in range(kh):
        for dx in range(kw):
            start = dy * W + dx                       # >= 0 thanks to halo pad
            vals = x_ref[:, :, start:start + HW]      # (bn, cin, HW) lane-offset load
            # emulate the missing W zero-padding for boundary taps
            lo = max(0, pad - dx)
            hi = min(W, W + pad - dx)
            if lo > 0 or hi < W:
                vals = jnp.where((wcol >= lo) & (wcol < hi), vals, 0.0)
            for b in range(bn):
                slab_ref[tap * cin:(tap + 1) * cin, b * HW:(b + 1) * HW] = vals[b]
            tap += 1

    # ---- single MXU matmul over the folded K = kh*kw*Cin dimension ----
    acc = jnp.dot(w_ref[...], slab_ref[...], preferred_element_type=jnp.float32)
    acc = acc + b_ref[...].astype(jnp.float32)        # broadcast (2*Cout, 1) over lanes

    # ---- Max-Feature-Map: elementwise max of the two channel halves ----
    out = jnp.maximum(acc[:cout, :], acc[cout:, :])   # (Cout, bn*HW), lane-dense

    for b in range(bn):
        o_ref[b] = out[:, b * HW:(b + 1) * HW].astype(o_ref.dtype)


def mfm_forward(x_nchw, weight, bias, *, out_channels, kernel_size=3, stride=1,
                padding=1, batch_block=None):
    """Pallas implementation of mfm.forward (type=1, conv path).

    x_nchw : (N, Cin, H, W)          float32
    weight : (2*Cout, Cin, kh, kw)   float32  (PyTorch conv layout)
    bias   : (2*Cout,)               float32
    returns: (N, Cout, H, W)         float32
    """
    N, Cin, H, W = x_nchw.shape
    two_cout, cin_w, kh, kw = weight.shape
    assert two_cout == 2 * out_channels and cin_w == Cin
    assert stride == 1, "kernel implements the module defaults (stride=1)"
    H_out = H + 2 * padding - kh + 1
    W_out = W + 2 * padding - kw + 1
    assert H_out == H and W_out == W, (
        "kernel assumes the 'same' conv of the module defaults (k=3, s=1, p=1)")

    HW = H * W
    K = kh * kw * Cin

    # ---- wrapper glue (no transposes): pad H, flatten spatial, add flat halo ----
    x_flat = jnp.pad(x_nchw, ((0, 0), (0, 0), (padding, padding), (0, 0)))
    x_flat = x_flat.reshape(N, Cin, (H + 2 * padding) * W)
    x_flat = jnp.pad(x_flat, ((0, 0), (0, 0), (padding, padding)))
    F = x_flat.shape[-1]

    # weights -> (2*Cout, kh*kw*Cin), contraction rows ordered (dy, dx, cin)
    w_flat = jnp.transpose(weight, (0, 2, 3, 1)).reshape(two_cout, K)
    b_col = bias.reshape(two_cout, 1)

    bn = batch_block if batch_block is not None else _pick_bn(N)
    assert N % bn == 0
    grid = (N // bn,)

    kernel = functools.partial(_mfm_conv_kernel, kh=kh, kw=kw, pad=padding, W=W)

    out_flat = pl.pallas_call(
        kernel,
        out_shape=jax.ShapeDtypeStruct((N, out_channels, HW), x_nchw.dtype),
        grid_spec=pltpu.PrefetchScalarGridSpec(
            num_scalar_prefetch=0,
            grid=grid,
            in_specs=[
                pl.BlockSpec((bn, Cin, F), lambda n: (n, 0, 0)),
                pl.BlockSpec((two_cout, K), lambda n: (0, 0)),
                pl.BlockSpec((two_cout, 1), lambda n: (0, 0)),
            ],
            out_specs=pl.BlockSpec((bn, out_channels, HW), lambda n: (n, 0, 0)),
            scratch_shapes=[pltpu.VMEM((K, bn * HW), jnp.float32)],
        ),
        compiler_params=pltpu.CompilerParams(
            dimension_semantics=("parallel",),
            vmem_limit_bytes=32 * 1024 * 1024,
        ),
    )(x_flat, w_flat, b_col)

    # flat spatial -> (H, W); channel-major already (no transpose needed)
    return out_flat.reshape(N, out_channels, H, W)


def _reference_mfm(x_nchw, weight, bias, out_channels, padding=1):
    """Pure-JAX reference (lax conv) for validation."""
    y = jax.lax.conv_general_dilated(
        x_nchw, weight,
        window_strides=(1, 1),
        padding=((padding, padding), (padding, padding)),
        dimension_numbers=("NCHW", "OIHW", "NCHW"),
    ) + bias.reshape(1, -1, 1, 1)
    return jnp.maximum(y[:, :out_channels], y[:, out_channels:])


if __name__ == "__main__":
    # Small shapes consistent with the module: batch=2, in_channels=4,
    # out_channels=4, spatial 16x16, kernel_size=3, stride=1, padding=1.
    N, Cin, H, W = 2, 4, 16, 16
    Cout = 4
    kh = kw = 3

    key = jax.random.PRNGKey(0)
    kx, kw_key, kb_key = jax.random.split(key, 3)
    x = jax.random.normal(kx, (N, Cin, H, W), dtype=jnp.float32)
    # deterministic parameter init (PyTorch-like uniform fan-in scaling)
    fan_in = Cin * kh * kw
    bound = 1.0 / (fan_in ** 0.5)
    weight = jax.random.uniform(kw_key, (2 * Cout, Cin, kh, kw),
                                minval=-bound, maxval=bound, dtype=jnp.float32)
    bias = jax.random.uniform(kb_key, (2 * Cout,),
                              minval=-bound, maxval=bound, dtype=jnp.float32)

    out = mfm_forward(x, weight, bias, out_channels=Cout,
                      kernel_size=3, stride=1, padding=1)
    out = jax.block_until_ready(out)

    ref = _reference_mfm(x, weight, bias, Cout)
    assert out.shape == (N, Cout, H, W)
    assert jnp.allclose(out, ref, atol=1e-4, rtol=1e-4)

    print("KERNEL_OK")
</pallas_src>

<mosaic_0001>
module attributes {stable_mosaic.version = 11 : i64} {
  func.func @_mfm_conv_kernel(%arg0: i32, %arg1: memref<1x4x290xf32, #tpu.memory_space<vmem>>, %arg2: memref<8x36xf32, #tpu.memory_space<vmem>>, %arg3: memref<8x1xf32, #tpu.memory_space<vmem>>, %arg4: memref<1x4x256xf32, #tpu.memory_space<vmem>>, %arg5: memref<36x256xf32, #tpu.memory_space<vmem>>) attributes {dimension_semantics = [#tpu.dimension_semantics<parallel>], iteration_bounds = array<i64: 2>, scalar_prefetch = 0 : i64, scratch_operands = 1 : i64, tpu.core_type = #tpu.core_type<tc>, window_params = [{transform_indices = @transform_0, window_bounds = array<i64: 1, 4, 290>}, {pipeline_mode = #tpu.pipeline_mode<synchronous>, transform_indices = @transform_1, window_bounds = array<i64: 8, 36>}, {pipeline_mode = #tpu.pipeline_mode<synchronous>, transform_indices = @transform_2, window_bounds = array<i64: 8, 1>}, {transform_indices = @transform_3, window_bounds = array<i64: 1, 4, 256>}]} {
    %0 = tpu.iota {dimensions = array<i32: 1>} : vector<1x256xi32>
    %c16_i32 = arith.constant 16 : i32
    %c0_i32 = arith.constant 0 : i32
    %1 = arith.cmpi eq, %c16_i32, %c0_i32 : i32
    %c1_i32 = arith.constant 1 : i32
    %2 = arith.select %1, %c1_i32, %c16_i32 : i32
    %3 = vector.broadcast %2 : i32 to vector<1x256xi32>
    %4 = arith.remsi %0, %3 : vector<1x256xi32>
    %c0_i32_0 = arith.constant 0 : i32
    %5 = vector.broadcast %c0_i32_0 : i32 to vector<1x256xi32>
    %6 = arith.cmpi ne, %4, %5 : vector<1x256xi32>
    %c0_i32_1 = arith.constant 0 : i32
    %7 = vector.broadcast %c0_i32_1 : i32 to vector<1x256xi32>
    %8 = arith.cmpi slt, %4, %7 : vector<1x256xi32>
    %c0_i32_2 = arith.constant 0 : i32
    %9 = arith.cmpi slt, %2, %c0_i32_2 : i32
    %10 = vector.broadcast %9 : i1 to vector<1x256xi1>
    %11 = vector.broadcast %10 : vector<1x256xi1> to vector<1x256xi1>
    %12 = arith.xori %8, %11 : vector<1x256xi1>
    %13 = arith.andi %12, %6 : vector<1x256xi1>
    %14 = vector.broadcast %2 : i32 to vector<1x256xi32>
    %15 = arith.addi %4, %14 : vector<1x256xi32>
    %16 = arith.select %13, %15, %4 : vector<1x256xi1>, vector<1x256xi32>
    %c0 = arith.constant 0 : index
    %c0_3 = arith.constant 0 : index
    %c0_4 = arith.constant 0 : index
    %17 = vector.load %arg1[%c0, %c0_3, %c0_4] : memref<1x4x290xf32, #tpu.memory_space<vmem>>, vector<1x4x256xf32>
    %c1_i32_5 = arith.constant 1 : i32
    %18 = vector.broadcast %c1_i32_5 : i32 to vector<1x256xi32>
    %19 = arith.cmpi sge, %16, %18 : vector<1x256xi32>
    %c16_i32_6 = arith.constant 16 : i32
    %20 = vector.broadcast %c16_i32_6 : i32 to vector<1x256xi32>
    %21 = arith.cmpi slt, %16, %20 : vector<1x256xi32>
    %22 = arith.andi %19, %21 : vector<1x256xi1>
    %cst = arith.constant 0.000000e+00 : f32
    %23 = vector.shape_cast %22 : vector<1x256xi1> to vector<1x1x256xi1>
    %24 = vector.broadcast %23 : vector<1x1x256xi1> to vector<1x4x256xi1>
    %25 = vector.broadcast %cst : f32 to vector<1x4x256xf32>
    %26 = arith.select %24, %17, %25 : vector<1x4x256xi1>, vector<1x4x256xf32>
    %27 = vector.shape_cast %26 : vector<1x4x256xf32> to vector<4x256xf32>
    %c0_7 = arith.constant 0 : index
    %c0_8 = arith.constant 0 : index
    %28 = vector.load %arg5[%c0_7, %c0_8] : memref<36x256xf32, #tpu.memory_space<vmem>>, vector<4x256xf32>
    tpu.vector_store %arg5[%c0_7, %c0_8], %27 {strides = array<i32>} : memref<36x256xf32, #tpu.memory_space<vmem>>, vector<4x256xf32>,
    %c0_9 = arith.constant 0 : index
    %c0_10 = arith.constant 0 : index
    %c1 = arith.constant 1 : index
    %29 = vector.load %arg1[%c0_9, %c0_10, %c1] : memref<1x4x290xf32, #tpu.memory_space<vmem>>, vector<1x4x256xf32>
    %30 = vector.shape_cast %29 : vector<1x4x256xf32> to vector<4x256xf32>
    %c4 = arith.constant 4 : index
    %c0_11 = arith.constant 0 : index
    %31 = vector.load %arg5[%c4, %c0_11] : memref<36x256xf32, #tpu.memory_space<vmem>>, vector<4x256xf32>
    tpu.vector_store %arg5[%c4, %c0_11], %30 {strides = array<i32>} : memref<36x256xf32, #tpu.memory_space<vmem>>, vector<4x256xf32>,
    %c0_12 = arith.constant 0 : index
    %c0_13 = arith.constant 0 : index
    %c2 = arith.constant 2 : index
    %32 = vector.load %arg1[%c0_12, %c0_13, %c2] : memref<1x4x290xf32, #tpu.memory_space<vmem>>, vector<1x4x256xf32>
    %c0_i32_14 = arith.constant 0 : i32
    %33 = vector.broadcast %c0_i32_14 : i32 to vector<1x256xi32>
    %34 = arith.cmpi sge, %16, %33 : vector<1x256xi32>
    %c15_i32 = arith.constant 15 : i32
    %35 = vector.broadcast %c15_i32 : i32 to vector<1x256xi32>
    %36 = arith.cmpi slt, %16, %35 : vector<1x256xi32>
    %37 = arith.andi %34, %36 : vector<1x256xi1>
    %cst_15 = arith.constant 0.000000e+00 : f32
    %38 = vector.shape_cast %37 : vector<1x256xi1> to vector<1x1x256xi1>
    %39 = vector.broadcast %38 : vector<1x1x256xi1> to vector<1x4x256xi1>
    %40 = vector.broadcast %cst_15 : f32 to vector<1x4x256xf32>
    %41 = arith.select %39, %32, %40 : vector<1x4x256xi1>, vector<1x4x256xf32>
    %42 = vector.shape_cast %41 : vector<1x4x256xf32> to vector<4x256xf32>
    %c8 = arith.constant 8 : index
    %c0_16 = arith.constant 0 : index
    %43 = vector.load %arg5[%c8, %c0_16] : memref<36x256xf32, #tpu.memory_space<vmem>>, vector<4x256xf32>
    tpu.vector_store %arg5[%c8, %c0_16], %42 {strides = array<i32>} : memref<36x256xf32, #tpu.memory_space<vmem>>, vector<4x256xf32>,
    %c0_17 = arith.constant 0 : index
    %c0_18 = arith.constant 0 : index
    %c16 = arith.constant 16 : index
    %44 = vector.load %arg1[%c0_17, %c0_18, %c16] : memref<1x4x290xf32, #tpu.memory_space<vmem>>, vector<1x4x256xf32>
    %c1_i32_19 = arith.constant 1 : i32
    %45 = vector.broadcast %c1_i32_19 : i32 to vector<1x256xi32>
    %46 = arith.cmpi sge, %16, %45 : vector<1x256xi32>
    %c16_i32_20 = arith.constant 16 : i32
    %47 = vector.broadcast %c16_i32_20 : i32 to vector<1x256xi32>
    %48 = arith.cmpi slt, %16, %47 : vector<1x256xi32>
    %49 = arith.andi %46, %48 : vector<1x256xi1>
    %cst_21 = arith.constant 0.000000e+00 : f32
    %50 = vector.shape_cast %49 : vector<1x256xi1> to vector<1x1x256xi1>
    %51 = vector.broadcast %50 : vector<1x1x256xi1> to vector<1x4x256xi1>
    %52 = vector.broadcast %cst_21 : f32 to vector<1x4x256xf32>
    %53 = arith.select %51, %44, %52 : vector<1x4x256xi1>, vector<1x4x256xf32>
    %54 = vector.shape_cast %53 : vector<1x4x256xf32> to vector<4x256xf32>
    %c12 = arith.constant 12 : index
    %c0_22 = arith.constant 0 : index
    %55 = vector.load %arg5[%c12, %c0_22] : memref<36x256xf32, #tpu.memory_space<vmem>>, vector<4x256xf32>
    tpu.vector_store %arg5[%c12, %c0_22], %54 {strides = array<i32>} : memref<36x256xf32, #tpu.memory_space<vmem>>, vector<4x256xf32>,
    %c0_23 = arith.constant 0 : index
    %c0_24 = arith.constant 0 : index
    %c17 = arith.constant 17 : index
    %56 = vector.load %arg1[%c0_23, %c0_24, %c17] : memref<1x4x290xf32, #tpu.memory_space<vmem>>, vector<1x4x256xf32>
    %57 = vector.shape_cast %56 : vector<1x4x256xf32> to vector<4x256xf32>
    %c16_25 = arith.constant 16 : index
    %c0_26 = arith.constant 0 : index
    %58 = vector.load %arg5[%c16_25, %c0_26] : memref<36x256xf32, #tpu.memory_space<vmem>>, vector<4x256xf32>
    tpu.vector_store %arg5[%c16_25, %c0_26], %57 {strides = array<i32>} : memref<36x256xf32, #tpu.memory_space<vmem>>, vector<4x256xf32>,
    %c0_27 = arith.constant 0 : index
    %c0_28 = arith.constant 0 : index
    %c18 = arith.constant 18 : index
    %59 = vector.load %arg1[%c0_27, %c0_28, %c18] : memref<1x4x290xf32, #tpu.memory_space<vmem>>, vector<1x4x256xf32>
    %c0_i32_29 = arith.constant 0 : i32
    %60 = vector.broadcast %c0_i32_29 : i32 to vector<1x256xi32>
    %61 = arith.cmpi sge, %16, %60 : vector<1x256xi32>
    %c15_i32_30 = arith.constant 15 : i32
    %62 = vector.broadcast %c15_i32_30 : i32 to vector<1x256xi32>
    %63 = arith.cmpi slt, %16, %62 : vector<1x256xi32>
    %64 = arith.andi %61, %63 : vector<1x256xi1>
    %cst_31 = arith.constant 0.000000e+00 : f32
    %65 = vector.shape_cast %64 : vector<1x256xi1> to vector<1x1x256xi1>
    %66 = vector.broadcast %65 : vector<1x1x256xi1> to vector<1x4x256xi1>
    %67 = vector.broadcast %cst_31 : f32 to vector<1x4x256xf32>
    %68 = arith.select %66, %59, %67 : vector<1x4x256xi1>, vector<1x4x256xf32>
    %69 = vector.shape_cast %68 : vector<1x4x256xf32> to vector<4x256xf32>
    %c20 = arith.constant 20 : index
    %c0_32 = arith.constant 0 : index
    %70 = vector.load %arg5[%c20, %c0_32] : memref<36x256xf32, #tpu.memory_space<vmem>>, vector<4x256xf32>
    tpu.vector_store %arg5[%c20, %c0_32], %69 {strides = array<i32>} : memref<36x256xf32, #tpu.memory_space<vmem>>, vector<4x256xf32>,
    %c0_33 = arith.constant 0 : index
    %c0_34 = arith.constant 0 : index
    %c32 = arith.constant 32 : index
    %71 = vector.load %arg1[%c0_33, %c0_34, %c32] : memref<1x4x290xf32, #tpu.memory_space<vmem>>, vector<1x4x256xf32>
    %c1_i32_35 = arith.constant 1 : i32
    %72 = vector.broadcast %c1_i32_35 : i32 to vector<1x256xi32>
    %73 = arith.cmpi sge, %16, %72 : vector<1x256xi32>
    %c16_i32_36 = arith.constant 16 : i32
    %74 = vector.broadcast %c16_i32_36 : i32 to vector<1x256xi32>
    %75 = arith.cmpi slt, %16, %74 : vector<1x256xi32>
    %76 = arith.andi %73, %75 : vector<1x256xi1>
    %cst_37 = arith.constant 0.000000e+00 : f32
    %77 = vector.shape_cast %76 : vector<1x256xi1> to vector<1x1x256xi1>
    %78 = vector.broadcast %77 : vector<1x1x256xi1> to vector<1x4x256xi1>
    %79 = vector.broadcast %cst_37 : f32 to vector<1x4x256xf32>
    %80 = arith.select %78, %71, %79 : vector<1x4x256xi1>, vector<1x4x256xf32>
    %81 = vector.shape_cast %80 : vector<1x4x256xf32> to vector<4x256xf32>
    %c24 = arith.constant 24 : index
    %c0_38 = arith.constant 0 : index
    %82 = vector.load %arg5[%c24, %c0_38] : memref<36x256xf32, #tpu.memory_space<vmem>>, vector<4x256xf32>
    tpu.vector_store %arg5[%c24, %c0_38], %81 {strides = array<i32>} : memref<36x256xf32, #tpu.memory_space<vmem>>, vector<4x256xf32>,
    %c0_39 = arith.constant 0 : index
    %c0_40 = arith.constant 0 : index
    %c33 = arith.constant 33 : index
    %83 = vector.load %arg1[%c0_39, %c0_40, %c33] : memref<1x4x290xf32, #tpu.memory_space<vmem>>, vector<1x4x256xf32>
    %84 = vector.shape_cast %83 : vector<1x4x256xf32> to vector<4x256xf32>
    %c28 = arith.constant 28 : index
    %c0_41 = arith.constant 0 : index
    %85 = vector.load %arg5[%c28, %c0_41] : memref<36x256xf32, #tpu.memory_space<vmem>>, vector<4x256xf32>
    tpu.vector_store %arg5[%c28, %c0_41], %84 {strides = array<i32>} : memref<36x256xf32, #tpu.memory_space<vmem>>, vector<4x256xf32>,
    %c0_42 = arith.constant 0 : index
    %c0_43 = arith.constant 0 : index
    %c34 = arith.constant 34 : index
    %86 = vector.load %arg1[%c0_42, %c0_43, %c34] : memref<1x4x290xf32, #tpu.memory_space<vmem>>, vector<1x4x256xf32>
    %c0_i32_44 = arith.constant 0 : i32
    %87 = vector.broadcast %c0_i32_44 : i32 to vector<1x256xi32>
    %88 = arith.cmpi sge, %16, %87 : vector<1x256xi32>
    %c15_i32_45 = arith.constant 15 : i32
    %89 = vector.broadcast %c15_i32_45 : i32 to vector<1x256xi32>
    %90 = arith.cmpi slt, %16, %89 : vector<1x256xi32>
    %91 = arith.andi %88, %90 : vector<1x256xi1>
    %cst_46 = arith.constant 0.000000e+00 : f32
    %92 = vector.shape_cast %91 : vector<1x256xi1> to vector<1x1x256xi1>
    %93 = vector.broadcast %92 : vector<1x1x256xi1> to vector<1x4x256xi1>
    %94 = vector.broadcast %cst_46 : f32 to vector<1x4x256xf32>
    %95 = arith.select %93, %86, %94 : vector<1x4x256xi1>, vector<1x4x256xf32>
    %96 = vector.shape_cast %95 : vector<1x4x256xf32> to vector<4x256xf32>
    %c32_47 = arith.constant 32 : index
    %c0_48 = arith.constant 0 : index
    %97 = vector.load %arg5[%c32_47, %c0_48] : memref<36x256xf32, #tpu.memory_space<vmem>>, vector<4x256xf32>
    tpu.vector_store %arg5[%c32_47, %c0_48], %96 {strides = array<i32>} : memref<36x256xf32, #tpu.memory_space<vmem>>, vector<4x256xf32>,
    %c0_49 = arith.constant 0 : index
    %c0_50 = arith.constant 0 : index
    %98 = vector.load %arg2[%c0_49, %c0_50] : memref<8x36xf32, #tpu.memory_space<vmem>>, vector<8x36xf32>
    %c0_51 = arith.constant 0 : index
    %c0_52 = arith.constant 0 : index
    %99 = vector.load %arg5[%c0_51, %c0_52] : memref<36x256xf32, #tpu.memory_space<vmem>>, vector<36x256xf32>
    %cst_53 = arith.constant dense<0.000000e+00> : vector<8x256xf32>
    %100 = tpu.matmul %98, %99, %cst_53 {dimension_numbers = #tpu.dot_dimension_numbers<[1], [0], [0], [1], [0, 0, 1, 1], [], []>} : vector<8x36xf32>, vector<36x256xf32>, vector<8x256xf32> -> vector<8x256xf32>
    %c0_54 = arith.constant 0 : index
    %c0_55 = arith.constant 0 : index
    %101 = vector.load %arg3[%c0_54, %c0_55] : memref<8x1xf32, #tpu.memory_space<vmem>>, vector<8x1xf32>
    %102 = vector.broadcast %101 : vector<8x1xf32> to vector<8x256xf32>
    %103 = arith.addf %100, %102 : vector<8x256xf32>
    %104 = vector.extract_strided_slice %103 {offsets = [0, 0], sizes = [4, 256], strides = [1, 1]} : vector<8x256xf32> to vector<4x256xf32>
    %105 = vector.extract_strided_slice %103 {offsets = [4, 0], sizes = [4, 256], strides = [1, 1]} : vector<8x256xf32> to vector<4x256xf32>
    %106 = arith.maximumf %104, %105 : vector<4x256xf32>
    %c0_56 = arith.constant 0 : index
    %c0_57 = arith.constant 0 : index
    %c0_58 = arith.constant 0 : index
    %107 = vector.load %arg4[%c0_56, %c0_57, %c0_58] : memref<1x4x256xf32, #tpu.memory_space<vmem>>, vector<1x4x256xf32>
    %108 = vector.shape_cast %107 : vector<1x4x256xf32> to vector<4x256xf32>
    %109 = vector.shape_cast %106 : vector<4x256xf32> to vector<1x4x256xf32>
    tpu.vector_store %arg4[%c0_56, %c0_57, %c0_58], %109 {strides = array<i32>} : memref<1x4x256xf32, #tpu.memory_space<vmem>>, vector<1x4x256xf32>,
    return
  }
  func.func @transform_0(%arg0: i32) -> (i32, i32, i32) {
    %c0_i32 = arith.constant 0 : i32
    %c0_i32_0 = arith.constant 0 : i32
    %c0_i32_1 = arith.constant 0 : i32
    return %arg0, %c0_i32, %c0_i32_0 : i32, i32, i32
  }
  func.func @transform_1(%arg0: i32) -> (i32, i32) {
    %c0_i32 = arith.constant 0 : i32
    %c0_i32_0 = arith.constant 0 : i32
    %c0_i32_1 = arith.constant 0 : i32
    return %c0_i32, %c0_i32_0 : i32, i32
  }
  func.func @transform_2(%arg0: i32) -> (i32, i32) {
    %c0_i32 = arith.constant 0 : i32
    %c0_i32_0 = arith.constant 0 : i32
    %c0_i32_1 = arith.constant 0 : i32
    return %c0_i32, %c0_i32_0 : i32, i32
  }
  func.func @transform_3(%arg0: i32) -> (i32, i32, i32) {
    %c0_i32 = arith.constant 0 : i32
    %c0_i32_0 = arith.constant 0 : i32
    %c0_i32_1 = arith.constant 0 : i32
    return %arg0, %c0_i32, %c0_i32_0 : i32, i32, i32
  }
}

</mosaic_0001>

<llo_original>
// kernel: tpu_custom_call.1
$region0: #{tpu_custom_call.1}
  #allocation0 [shape = 'u32[]', space=smem, size = 0x4, offset = 0x4, fixed_abs, tag = 'smem constant byte address 0x4 - core index']
  #allocation1 [shape = 'u32[72,128]{1,0:T(1,128)}', space=vmem, size = 0x9000, scoped, tag = 'internal scratch']
  #allocation2 [shape = 'f32[36,256]{1,0:T(8,128)}', space=vmem, size = 0xa000, scoped, tag = 'scratch operand']
  %s0 = inlined_call_operand.hbm [shape: f32[2,4,290], index: 0, kind: input, shape index: {}]
  %s1 = inlined_call_operand.vmem [shape: f32[8,36], index: 1, kind: input, shape index: {}]
  %s2 = inlined_call_operand.vmem [shape: f32[8,1], index: 2, kind: input, shape index: {}]
  %s3 = inlined_call_operand.hbm [shape: f32[2,4,256], index: 3, kind: output, shape index: {}]
  %s4 = sld [smem:[#allocation0]]
  $region49: #{tpu_custom_call.1} parent=0
    _
  %s6 = ssub.s32 1, %s4
  %s7 = scalar_select 0, %s6, %s4
  $region1: #{tpu_custom_call.1} parent=0
    #allocation3 [shape = 'u8[12288]{0}', space=vmem, size = 0x3000, scoped, tag = 'input window, operand 0']
    #allocation4 [shape = 's32[2]{0}', space=sflag, size = 0x8, scoped, tag = 'scoped memory for tpu_custom_call.1']
    #allocation5 [shape = 's32[2]{0}', space=sflag, size = 0x8, scoped, tag = 'scoped memory for tpu_custom_call.1']
    #allocation6 [shape = 'u8[8192]{0}', space=vmem, size = 0x2000, scoped, tag = 'output window, operand 0']
    %8 = vsyncpa [#allocation4], 0
    %s9 = scalar_lea.sflag [#allocation4], 1
    %10 = vsyncpa %s9, 0
    %11 = vsyncpa [#allocation5], 0
    %s12 = scalar_lea.sflag [#allocation5], 1
    %13 = vsyncpa %s12, 0
    loop: start=0, step=1, limit=4
    $region2: #{tpu_custom_call.1} parent=1 // loop_pre_header
      _
    $region3: #{tpu_custom_call.1} parent=1 // loop_header
      %s15 = sphi 0, %s19
      %p16 = scmp.ge.s32.totalorder %s15, 4
      %s25 = sphi 0, %s27
      %s28 = sphi 0, %s25
      %s29 = sphi 0, %s28
      %s45 = sphi 0, %s29
      %s49 = sphi 0, %s49
      %s51 = sphi 0, %s49
      %s52 = sphi 0, %s51
      %s66 = sphi 0, %s52
      %s70 = sphi 0, %s70
      %s72 = sphi 0, %s70
      %s73 = sphi 0, %s72
      %s87 = sphi 0, %s73
      %s93 = sphi 0, %s95
      %s96 = sphi 0, %s93
      %s97 = sphi 0, %s96
      %s113 = sphi 0, %s97
    $region4: #{tpu_custom_call.1} parent=1 // loop_header_branch
      %18 = sbr.rel (%p16) target = $region8
    $region5: #{tpu_custom_call.1} parent=1 // loop_body
      %s20 = ssub.s32 %s15, 1
      %s21 = ssub.s32 %s15, 2
      %s22 = sadd.s32 %s15, 1
      %s23 = ssub.s32 %s15, %s22
      %p24 = scmp.eq.s32.totalorder %s23, 0
      %s26 = sadd.s32 %s25, 1
      %s27 = scalar_select %p24, %s25, %s26
      %p30 = pneg %p24
      %p31 = scmp.eq.s32.totalorder %s15, 1
      %p32 = por %p30, %p31
      %p33 = scmp.ne.s32.totalorder %s25, %s28
      %p34 = scmp.eq.s32.totalorder %s15, 0
      %p35 = por %p33, %p34
      %p36 = scmp.ne.s32.totalorder %s25, %s28
      %p37 = scmp.eq.s32.totalorder %s20, 1
      %p38 = por %p36, %p37
      %p39 = scmp.ne.s32.totalorder %s28, %s29
      %p40 = scmp.eq.s32.totalorder %s20, 0
      %p41 = por %p39, %p40
      %p42 = scmp.ne.s32.totalorder %s28, %s29
      %p43 = scmp.eq.s32.totalorder %s21, 1
      %p44 = por %p42, %p43
      %p46 = scmp.ne.s32.totalorder %s29, %s45
      %p47 = scmp.eq.s32.totalorder %s21, 0
      %p48 = por %p46, %p47
      %s50 = sadd.s32 %s49, 1
      %p53 = scmp.eq.s32.totalorder %s15, 1
      %p54 = scmp.ne.s32.totalorder %s49, %s51
      %p55 = scmp.eq.s32.totalorder %s15, 0
      %p56 = por %p54, %p55
      %p57 = scmp.ne.s32.totalorder %s49, %s51
      %p58 = scmp.eq.s32.totalorder %s20, 1
      %p59 = por %p57, %p58
      %p60 = scmp.ne.s32.totalorder %s51, %s52
      %p61 = scmp.eq.s32.totalorder %s20, 0
      %p62 = por %p60, %p61
      %p63 = scmp.ne.s32.totalorder %s51, %s52
      %p64 = scmp.eq.s32.totalorder %s21, 1
      %p65 = por %p63, %p64
      %p67 = scmp.ne.s32.totalorder %s52, %s66
      %p68 = scmp.eq.s32.totalorder %s21, 0
      %p69 = por %p67, %p68
      %s71 = sadd.s32 %s70, 1
      %p74 = scmp.eq.s32.totalorder %s15, 1
      %p75 = scmp.ne.s32.totalorder %s70, %s72
      %p76 = scmp.eq.s32.totalorder %s15, 0
      %p77 = por %p75, %p76
      %p78 = scmp.ne.s32.totalorder %s70, %s72
      %p79 = scmp.eq.s32.totalorder %s20, 1
      %p80 = por %p78, %p79
      %p81 = scmp.ne.s32.totalorder %s72, %s73
      %p82 = scmp.eq.s32.totalorder %s20, 0
      %p83 = por %p81, %p82
      %p84 = scmp.ne.s32.totalorder %s72, %s73
      %p85 = scmp.eq.s32.totalorder %s21, 1
      %p86 = por %p84, %p85
      %p88 = scmp.ne.s32.totalorder %s73, %s87
      %p89 = scmp.eq.s32.totalorder %s21, 0
      %p90 = por %p88, %p89
      %s91 = ssub.s32 %s15, %s22
      %p92 = scmp.eq.s32.totalorder %s91, 0
      %s94 = sadd.s32 %s93, 1
      %s95 = scalar_select %p92, %s93, %s94
      %p98 = pneg %p92
      %p99 = scmp.eq.s32.totalorder %s15, 1
      %p100 = por %p98, %p99
      %p101 = scmp.ne.s32.totalorder %s93, %s96
      %p102 = scmp.eq.s32.totalorder %s15, 0
      %p103 = por %p101, %p102
      %p104 = scmp.ne.s32.totalorder %s93, %s96
      %p105 = scmp.eq.s32.totalorder %s20, 1
      %p106 = por %p104, %p105
      %p107 = scmp.ne.s32.totalorder %s96, %s97
      %p108 = scmp.eq.s32.totalorder %s20, 0
      %p109 = por %p107, %p108
      %p110 = scmp.ne.s32.totalorder %s96, %s97
      %p111 = scmp.eq.s32.totalorder %s21, 1
      %p112 = por %p110, %p111
      %p114 = scmp.ne.s32.totalorder %s97, %s113
      %p115 = scmp.eq.s32.totalorder %s21, 0
      %p116 = por %p114, %p115
      %p117 = scmp.le.s32.totalorder 1, %s15
      %p118 = scmp.lt.s32.totalorder %s15, 3
      %p119 = pnand %p117, %p118
      %p120 = pneg %p119
      // Predicated region
      $region9: #{tpu_custom_call.1} parent=5 // pred_check
        _
      $region10: #{tpu_custom_call.1} parent=5 // pred_check_branch
        %122 = sbr.rel (%p119) target = $region12
      $region11: #{tpu_custom_call.1} parent=5 // pred_region
        %s123 = ssub.s32 %s15, 1
        // Predicated region
        $region13: #{tpu_custom_call.1} parent=11 // pred_check
          %p124 = pneg %p62
        $region14: #{tpu_custom_call.1} parent=11 // pred_check_branch
          %126 = sbr.rel (%p124) target = $region16
        $region15: #{tpu_custom_call.1} parent=11 // pred_region
          _
        $region16: #{tpu_custom_call.1} parent=11 // pred_fallthru
          _
        // Predicated region
        $region17: #{tpu_custom_call.1} parent=11 // pred_check
          %p127 = pneg %p83
        $region18: #{tpu_custom_call.1} parent=11 // pred_check_branch
          %129 = sbr.rel (%p127) target = $region20
        $region19: #{tpu_custom_call.1} parent=11 // pred_region
          _
        $region20: #{tpu_custom_call.1} parent=11 // pred_fallthru
          _
      $region12: #{tpu_custom_call.1} parent=5 // pred_fallthru
        _
      %p130 = scmp.lt.s32.totalorder %s15, 2
      // Predicated region
      $region21: #{tpu_custom_call.1} parent=5 // pred_check
        %p131 = pneg %p130
      $region22: #{tpu_custom_call.1} parent=5 // pred_check_branch
        %133 = sbr.rel (%p131) target = $region24
      $region23: #{tpu_custom_call.1} parent=5 // pred_region
        // Predicated region
        $region25: #{tpu_custom_call.1} parent=23 // pred_check
          %p134 = pneg %p35
        $region26: #{tpu_custom_call.1} parent=23 // pred_check_branch
          %136 = sbr.rel (%p134) target = $region28
        $region27: #{tpu_custom_call.1} parent=23 // pred_region
          %s137 = sand.u32 %s25, 1
          %s138 = scalar_lea.sflag [#allocation4], %s137
          %s139 = sand.u32 %s25, 1
          %s140 = smul.addr %s139, 12
          %s141 = scalar_lea.vmem [#allocation3], %s140
          %143 = vsyncadd %s138, 0
          %s144 = smul.addr %s15, 3
          %s145 = smul.addr %s144, 4
          %s146 = scalar_lea.hbm %s0, %s145
          %s148 = sshll.u32 %s146, 4
          %s149 = int_to_ptr.hbm [resolvable:$true] %s148
          %s150 = sshll.u32 %s141, 4
          %s151 = int_to_ptr.vmem [resolvable:$true] %s150
          %153 = dma.hbm_to_vmem [thread:$0]  %s149, 192, %s151, %s138
        $region28: #{tpu_custom_call.1} parent=23 // pred_fallthru
          _
      $region24: #{tpu_custom_call.1} parent=5 // pred_fallthru
        _
      %p154 = scmp.le.s32.totalorder 1, %s15
      %p155 = scmp.lt.s32.totalorder %s15, 3
      %p156 = pnand %p154, %p155
      %p157 = pneg %p156
      // Predicated region
      $region29: #{tpu_custom_call.1} parent=5 // pred_check
        _
      $region30: #{tpu_custom_call.1} parent=5 // pred_check_branch
        %159 = sbr.rel (%p156) target = $region32
      $region31: #{tpu_custom_call.1} parent=5 // pred_region
        %s160 = ssub.s32 %s15, 1
        %s161 = sand.u32 %s28, 1
        %s162 = scalar_lea.sflag [#allocation4], %s161
        %s163 = sand.u32 %s28, 1
        %s164 = smul.addr %s163, 12
        %s165 = scalar_lea.vmem [#allocation3], %s164
        // Predicated region
        $region33: #{tpu_custom_call.1} parent=31 // pred_check
          %p166 = pneg %p41
        $region34: #{tpu_custom_call.1} parent=31 // pred_check_branch
          %168 = sbr.rel (%p166) target = $region36
        $region35: #{tpu_custom_call.1} parent=31 // pred_region
          %170 = dma.done %s162, 192
        $region36: #{tpu_custom_call.1} parent=31 // pred_fallthru
          _
        %s171 = sand.u32 %s28, 1
        %s172 = scalar_lea.sflag [#allocation4], %s171
        %s173 = sand.u32 %s28, 1
        %s174 = smul.addr %s173, 12
        %s175 = scalar_lea.vmem [#allocation3], %s174
        %p176 = pneg %p41
        %p177 = pneg %p38
        %p178 = pneg %p62
        %p179 = pneg %p59
        %p180 = pneg %p83
        %p181 = pneg %p80
        %p182 = pneg %p109
        %p183 = pneg %p106
        %s184 = sand.u32 %s96, 1
        %s185 = scalar_lea.sflag [#allocation5], %s184
        %s186 = sand.u32 %s96, 1
        %s187 = smul.addr %s186, 8
        %s188 = scalar_lea.vmem [#allocation6], %s187
        %v189 = vlaneseq
        %v190 = vand.u32 %v189, 127
        %v191 = vadd.s32 %v190, 128
        %vm192 = vcmp.lt.s32.totalorder %v190, 0
        %v193 = vsub.s32 0, %v190
        %v194 = vsel %vm192, %v193, %v190
        %v195 = vshrl.u32 %v194, 4
        %v196 = vand.u32 %v194, 15
        %v197 = vsub.s32 0, %v196
        %v198 = vsel %vm192, %v197, %v196
        %vm199 = vcmp.lt.s32.totalorder %v191, 0
        %v200 = vsub.s32 0, %v191
        %v201 = vsel %vm199, %v200, %v191
        %v202 = vshrl.u32 %v201, 4
        %v203 = vand.u32 %v201, 15
        %v204 = vsub.s32 0, %v203
        %v205 = vsel %vm199, %v204, %v203
        %vm206 = vcmp.ne.s32.totalorder %v198, 0
        %vm207 = vcmp.ne.s32.totalorder %v205, 0
        %vm208 = vcmp.lt.s32.totalorder %v198, 0
        %vm209 = vcmp.lt.s32.totalorder %v205, 0
        %vm210 = vmand %vm208, %vm206
        %vm211 = vmand %vm209, %vm207
        %v212 = vadd.s32 %v198, 16
        %v213 = vadd.s32 %v205, 16
        %v214 = vsel %vm210, %v212, %v198
        %v215 = vsel %vm211, %v213, %v205
        %v216 = vld [vmem:[%s165] sm:$0xff]
        %vm217 = vcmp.ge.s32.totalorder %v214, 1
        %vm218 = vcmp.ge.s32.totalorder %v215, 1
        %vm219 = vcmp.lt.s32.totalorder %v214, 16
        %vm220 = vcmp.lt.s32.totalorder %v215, 16
        %vm221 = vmand %vm217, %vm219
        %vm222 = vmand %vm218, %vm220
        %v223 = vsel %vm221, 1, 0
        %v224 = vsel %vm222, 1, 0
        %vm225 = vcmp.eq.s32.totalorder %v223, 1
        %vm226 = vcmp.eq.s32.totalorder %v224, 1
        %228 = vst [vmem:[#allocation1] ss:$2 sm:$0xff] %v216
        %v229 = vld.sshfl [vmem:[#allocation1] sm:$0xff pattern:$0x75316420]
        %v230 = vld.sshfl [vmem:[#allocation1 + $0x8] sm:$0xff pattern:$0x75316420]
        %v233 = vsel %vm225, %v229, 0.0
        %v234 = vsel %vm226, %v230, 0.0
        %235 = vst [vmem:[#allocation2] sm:$0xf] %v233
        %236 = vst [vmem:[#allocation2 + $0x8] sm:$0xf] %v234
        %v237 = vld [vmem:[%s165] sm:$0xff]
        %v238 = vld [vmem:[%s165 + $0x8] sm:$0xf]
        %s241 = scalar_lea.vmem [#allocation1], 1
        %242 = vst [vmem:[%s241] ss:$2 sm:$0xff] %v237
        %s243 = scalar_lea.vmem [#allocation1], 17
        %244 = vst [vmem:[%s243] ss:$2 sm:$0xff] %v238
        %v245 = vld.sshfl [vmem:[#allocation1] sm:$0xff pattern:$0x75316420]
        %v246 = vld.sshfl [vmem:[#allocation1 + $0x8] sm:$0xff pattern:$0x75316420]
        %v247 = vld.sshfl [vmem:[#allocation1 + $0x10] sm:$0xff pattern:$0x75316420]
        %248 = vrot.lane.b32.xlu0 %v245, 127
        %v249 = vpop.permute.xlu0 %248
        %250 = vrot.lane.b32.xlu0 %v246, 127
        %v251 = vpop.permute.xlu0 %250
        %252 = vrot.lane.b32.xlu0 %v247, 127
        %v253 = vpop.permute.xlu0 %252
        %vm254 = vcmask 1039360
        %v255 = vsel %vm254, %v249, %v251
        %v256 = vsel %vm254, %v251, %v253
        %259 = vst [vmem:[#allocation2] sm:$0xf0] %v255
        %260 = vst [vmem:[#allocation2 + $0x8] sm:$0xf0] %v256
        %v261 = vld [vmem:[%s165] sm:$0xff]
        %v262 = vld [vmem:[%s165 + $0x8] sm:$0xf]
        %vm263 = vcmp.ge.s32.totalorder %v214, 0
        %vm264 = vcmp.ge.s32.totalorder %v215, 0
        %vm265 = vcmp.lt.s32.totalorder %v214, 15
        %vm266 = vcmp.lt.s32.totalorder %v215, 15
        %vm267 = vmand %vm263, %vm265
        %vm268 = vmand %vm264, %vm266
        %v269 = vsel %vm267, 1, 0
        %v270 = vsel %vm268, 1, 0
        %vm271 = vcmp.eq.s32.totalorder %v269, 1
        %vm272 = vcmp.eq.s32.totalorder %v270, 1
        %275 = vst [vmem:[#allocation1] ss:$2 sm:$0xff] %v261
        %s276 = scalar_lea.vmem [#allocation1], 16
        %277 = vst [vmem:[%s276] ss:$2 sm:$0xff] %v262
        %v278 = vld.sshfl [vmem:[#allocation1] sm:$0xff pattern:$0x75316420]
        %v279 = vld.sshfl [vmem:[#allocation1 + $0x8] sm:$0xff pattern:$0x75316420]
        %v280 = vld.sshfl [vmem:[#allocation1 + $0x10] sm:$0xff pattern:$0x75316420]
        %281 = vrot.lane.b32.xlu0 %v278, 126
        %v282 = vpop.permute.xlu0 %281
        %283 = vrot.lane.b32.xlu0 %v279, 126
        %v284 = vpop.permute.xlu0 %283
        %285 = vrot.lane.b32.xlu0 %v280, 126
        %v286 = vpop.permute.xlu0 %285
        %vm287 = vcmask 1031168
        %v288 = vsel %vm287, %v282, %v284
        %v289 = vsel %vm287, %v284, %v286
        %v292 = vsel %vm271, %v288, 0.0
        %v293 = vsel %vm272, %v289, 0.0
        %294 = vst [vmem:[#allocation2 + $0x10] sm:$0xf] %v292
        %295 = vst [vmem:[#allocation2 + $0x18] sm:$0xf] %v293
        %v296 = vld [vmem:[%s165] sm:$0xff]
        %v297 = vld [vmem:[%s165 + $0x8] sm:$0xf]
        %300 = vst [vmem:[#allocation1] ss:$2 sm:$0xff] %v296
        %s301 = scalar_lea.vmem [#allocation1], 16
        %302 = vst [vmem:[%s301] ss:$2 sm:$0xff] %v297
        %v303 = vld.sshfl [vmem:[#allocation1] sm:$0xff pattern:$0x75316420]
        %v304 = vld.sshfl [vmem:[#allocation1 + $0x8] sm:$0xff pattern:$0x75316420]
        %v305 = vld.sshfl [vmem:[#allocation1 + $0x10] sm:$0xff pattern:$0x75316420]
        %306 = vrot.lane.b32.xlu0 %v303, 112
        %v307 = vpop.permute.xlu0 %306
        %308 = vrot.lane.b32.xlu0 %v304, 112
        %v309 = vpop.permute.xlu0 %308
        %310 = vrot.lane.b32.xlu0 %v305, 112
        %v311 = vpop.permute.xlu0 %310
        %vm312 = vcmask 916480
        %v313 = vsel %vm312, %v307, %v309
        %v314 = vsel %vm312, %v309, %v311
        %v317 = vsel %vm225, %v313, 0.0
        %v318 = vsel %vm226, %v314, 0.0
        %v321 = vrot.slane %v317, 4
        %v322 = vrot.slane %v318, 4
        %325 = vst [vmem:[#allocation2 + $0x10] sm:$0xf0] %v321
        %326 = vst [vmem:[#allocation2 + $0x18] sm:$0xf0] %v322
        %v327 = vld [vmem:[%s165] sm:$0xff]
        %v328 = vld [vmem:[%s165 + $0x8] sm:$0xf]
        %331 = vst [vmem:[#allocation1] ss:$2 sm:$0xff] %v327
        %s332 = scalar_lea.vmem [#allocation1], 16
        %333 = vst [vmem:[%s332] ss:$2 sm:$0xff] %v328
        %v334 = vld.sshfl [vmem:[#allocation1] sm:$0xff pattern:$0x75316420]
        %v335 = vld.sshfl [vmem:[#allocation1 + $0x8] sm:$0xff pattern:$0x75316420]
        %v336 = vld.sshfl [vmem:[#allocation1 + $0x10] sm:$0xff pattern:$0x75316420]
        %337 = vrot.lane.b32.xlu0 %v334, 111
        %v338 = vpop.permute.xlu0 %337
        %339 = vrot.lane.b32.xlu0 %v335, 111
        %v340 = vpop.permute.xlu0 %339
        %341 = vrot.lane.b32.xlu0 %v336, 111
        %v342 = vpop.permute.xlu0 %341
        %vm343 = vcmask 908288
        %v344 = vsel %vm343, %v338, %v340
        %v345 = vsel %vm343, %v340, %v342
        %348 = vst [vmem:[#allocation2 + $0x20] sm:$0xf] %v344
        %349 = vst [vmem:[#allocation2 + $0x28] sm:$0xf] %v345
        %v350 = vld [vmem:[%s165] sm:$0xff]
        %v351 = vld [vmem:[%s165 + $0x8] sm:$0xf]
        %354 = vst [vmem:[#allocation1] ss:$2 sm:$0xff] %v350
        %s355 = scalar_lea.vmem [#allocation1], 16
        %356 = vst [vmem:[%s355] ss:$2 sm:$0xff] %v351
        %v357 = vld.sshfl [vmem:[#allocation1] sm:$0xff pattern:$0x75316420]
        %v358 = vld.sshfl [vmem:[#allocation1 + $0x8] sm:$0xff pattern:$0x75316420]
        %v359 = vld.sshfl [vmem:[#allocation1 + $0x10] sm:$0xff pattern:$0x75316420]
        %360 = vrot.lane.b32.xlu0 %v357, 110
        %v361 = vpop.permute.xlu0 %360
        %362 = vrot.lane.b32.xlu0 %v358, 110
        %v363 = vpop.permute.xlu0 %362
        %364 = vrot.lane.b32.xlu0 %v359, 110
        %v365 = vpop.permute.xlu0 %364
        %vm366 = vcmask 900096
        %v367 = vsel %vm366, %v361, %v363
        %v368 = vsel %vm366, %v363, %v365
        %v371 = vsel %vm271, %v367, 0.0
        %v372 = vsel %vm272, %v368, 0.0
        %v375 = vrot.slane %v371, 4
        %v376 = vrot.slane %v372, 4
        %379 = vst [vmem:[#allocation2 + $0x20] sm:$0xf0] %v375
        %380 = vst [vmem:[#allocation2 + $0x28] sm:$0xf0] %v376
        %v381 = vld [vmem:[%s165] sm:$0xff]
        %v382 = vld [vmem:[%s165 + $0x8] sm:$0xf]
        %385 = vst [vmem:[#allocation1] ss:$2 sm:$0xff] %v381
        %s386 = scalar_lea.vmem [#allocation1], 16
        %387 = vst [vmem:[%s386] ss:$2 sm:$0xff] %v382
        %v388 = vld.sshfl [vmem:[#allocation1] sm:$0xff pattern:$0x75316420]
        %v389 = vld.sshfl [vmem:[#allocation1 + $0x8] sm:$0xff pattern:$0x75316420]
        %v390 = vld.sshfl [vmem:[#allocation1 + $0x10] sm:$0xff pattern:$0x75316420]
        %391 = vrot.lane.b32.xlu0 %v388, 96
        %v392 = vpop.permute.xlu0 %391
        %393 = vrot.lane.b32.xlu0 %v389, 96
        %v394 = vpop.permute.xlu0 %393
        %395 = vrot.lane.b32.xlu0 %v390, 96
        %v396 = vpop.permute.xlu0 %395
        %vm397 = vcmask 785408
        %v398 = vsel %vm397, %v392, %v394
        %v399 = vsel %vm397, %v394, %v396
        %v402 = vsel %vm225, %v398, 0.0
        %v403 = vsel %vm226, %v399, 0.0
        %404 = vst [vmem:[#allocation2 + $0x30] sm:$0xf] %v402
        %405 = vst [vmem:[#allocation2 + $0x38] sm:$0xf] %v403
        %v406 = vld [vmem:[%s165] sm:$0xff]
        %v407 = vld [vmem:[%s165 + $0x8] sm:$0xf]
        %s410 = scalar_lea.vmem [#allocation1], 1
        %411 = vst [vmem:[%s410] ss:$2 sm:$0xff] %v406
        %s412 = scalar_lea.vmem [#allocation1], 17
        %413 = vst [vmem:[%s412] ss:$2 sm:$0xff] %v407
        %v414 = vld.sshfl [vmem:[#allocation1] sm:$0xff pattern:$0x75316420]
        %v415 = vld.sshfl [vmem:[#allocation1 + $0x8] sm:$0xff pattern:$0x75316420]
        %v416 = vld.sshfl [vmem:[#allocation1 + $0x10] sm:$0xff pattern:$0x75316420]
        %417 = vrot.lane.b32.xlu0 %v414, 95
        %v418 = vpop.permute.xlu0 %417
        %419 = vrot.lane.b32.xlu0 %v415, 95
        %v420 = vpop.permute.xlu0 %419
        %421 = vrot.lane.b32.xlu0 %v416, 95
        %v422 = vpop.permute.xlu0 %421
        %vm423 = vcmask 777216
        %v424 = vsel %vm423, %v418, %v420
        %v425 = vsel %vm423, %v420, %v422
        %428 = vst [vmem:[#allocation2 + $0x30] sm:$0xf0] %v424
        %429 = vst [vmem:[#allocation2 + $0x38] sm:$0xf0] %v425
        %v430 = vld [vmem:[%s165] sm:$0xff]
        %v431 = vld [vmem:[%s165 + $0x8] sm:$0xf]
        %434 = vst [vmem:[#allocation1] ss:$2 sm:$0xff] %v430
        %s435 = scalar_lea.vmem [#allocation1], 16
        %436 = vst [vmem:[%s435] ss:$2 sm:$0xff] %v431
        %v437 = vld.sshfl [vmem:[#allocation1] sm:$0xff pattern:$0x75316420]
        %v438 = vld.sshfl [vmem:[#allocation1 + $0x8] sm:$0xff pattern:$0x75316420]
        %v439 = vld.sshfl [vmem:[#allocation1 + $0x10] sm:$0xff pattern:$0x75316420]
        %440 = vrot.lane.b32.xlu0 %v437, 94
        %v441 = vpop.permute.xlu0 %440
        %442 = vrot.lane.b32.xlu0 %v438, 94
        %v443 = vpop.permute.xlu0 %442
        %444 = vrot.lane.b32.xlu0 %v439, 94
        %v445 = vpop.permute.xlu0 %444
        %vm446 = vcmask 769024
        %v447 = vsel %vm446, %v441, %v443
        %v448 = vsel %vm446, %v443, %v445
        %v451 = vsel %vm271, %v447, 0.0
        %v452 = vsel %vm272, %v448, 0.0
        %453 = vst [vmem:[#allocation2 + $0x40] sm:$0xf] %v451
        %454 = vst [vmem:[#allocation2 + $0x48] sm:$0xf] %v452
        %v455 = vld [vmem:[%s1] sm:$0xff]
        %v456 = vld [vmem:[#allocation2] sm:$0xff]
        %v457 = vld [vmem:[#allocation2 + $0x8] sm:$0xff]
        %v458 = vld [vmem:[#allocation2 + $0x10] sm:$0xff]
        %v459 = vld [vmem:[#allocation2 + $0x18] sm:$0xff]
        %v460 = vld [vmem:[#allocation2 + $0x20] sm:$0xff]
        %v461 = vld [vmem:[#allocation2 + $0x28] sm:$0xff]
        %v462 = vld [vmem:[#allocation2 + $0x30] sm:$0xff]
        %v463 = vld [vmem:[#allocation2 + $0x38] sm:$0xff]
        %v464 = vld [vmem:[#allocation2 + $0x40] sm:$0xf]
        %v465 = vld [vmem:[#allocation2 + $0x48] sm:$0xf]
        %v466 = vld [vmem:[%s2] sm:$0xff]
        %468 = vset.pattern.permute.xlu0 0
        %469 = vperm.xlu0 %468, %v466
        %v470 = vpop.permute.xlu0 %469
        %vm472 = vcmask 293888
        %v474 = vsel %vm472, %v455, 0
        %vm476 = vcmask 1043456
        %v478 = vsel %vm476, %v464, 0
        %v481 = vsel %vm476, %v465, 0
        %483 = vmatpush.msra.mxu0 0.0
        %484 = vmatpush.msra.mxu0 0.0
        %485 = vmatpush.msra.mxu0 0.0
        %486 = vmatpush.msra.mxu0 0.0
        %487 = vmatpush.msra.mxu0 0.0
        %488 = vmatpush.msra.mxu0 0.0
        %489 = vmatpush.msra.mxu0 0.0
        %490 = vmatpush.msra.mxu0 0.0
        %491 = vmatpush.msra.mxu0 0.0
        %492 = vmatpush.msra.mxu0 0.0
        %493 = vmatpush.msra.mxu0 0.0
        %494 = vmatpush.msra.mxu0 %v478
        %495 = vmatpush.msra.mxu0 %v462
        %496 = vmatpush.msra.mxu0 %v460
        %497 = vmatpush.msra.mxu0 %v458
        %498 = vmatpush.msra.mxu0 %v456
        %499 = vmatmul.f32.gmra.mxu0 %v474
        %v500 = vpop.f32.mrf.mxu0
        %v501 = vadd.f32 %v470, %v500
        %502 = vdwg.mxu0
        %503 = vmatpush.msra.mxu0 0.0
        %504 = vmatpush.msra.mxu0 0.0
        %505 = vmatpush.msra.mxu0 0.0
        %506 = vmatpush.msra.mxu0 0.0
        %507 = vmatpush.msra.mxu0 0.0
        %508 = vmatpush.msra.mxu0 0.0
        %509 = vmatpush.msra.mxu0 0.0
        %510 = vmatpush.msra.mxu0 0.0
        %511 = vmatpush.msra.mxu0 0.0
        %512 = vmatpush.msra.mxu0 0.0
        %513 = vmatpush.msra.mxu0 0.0
        %514 = vmatpush.msra.mxu0 %v481
        %515 = vmatpush.msra.mxu0 %v463
        %516 = vmatpush.msra.mxu0 %v461
        %517 = vmatpush.msra.mxu0 %v459
        %518 = vmatpush.msra.mxu0 %v457
        %519 = vmatmul.f32.gmra.mxu0 %v474
        %v520 = vpop.f32.mrf.mxu0
        %v521 = vadd.f32 %v470, %v520
        %522 = vdwg.mxu0
        %v525 = vrot.slane %v501, 4
        %v526 = vrot.slane %v521, 4
        %v529 = vmax.f32 %v501, %v525
        %v530 = vmax.f32 %v521, %v526
        %v533 = vrot.slane %v530, 4
        %v534 = vsel %vm476, %v529, %v533
        %536 = vst [vmem:[%s188] sm:$0xff] %v534
        %s537 = sand.u32 %s96, 1
        %s538 = scalar_lea.sflag [#allocation5], %s537
        %s539 = sand.u32 %s96, 1
        %s540 = smul.addr %s539, 8
        %s541 = scalar_lea.vmem [#allocation6], %s540
        // Predicated region
        $region37: #{tpu_custom_call.1} parent=31 // pred_check
          %p542 = pneg %p106
        $region38: #{tpu_custom_call.1} parent=31 // pred_check_branch
          %544 = sbr.rel (%p542) target = $region40
        $region39: #{tpu_custom_call.1} parent=31 // pred_region
          %546 = vsyncadd %s538, 0
          %s547 = smul.addr %s20, 2
          %s548 = smul.addr %s547, 4
          %s549 = scalar_lea.hbm %s3, %s548
          %s551 = sshll.u32 %s541, 4
          %s552 = int_to_ptr.vmem [resolvable:$true] %s551
          %s553 = sshll.u32 %s549, 4
          %s554 = int_to_ptr.hbm [resolvable:$true] %s553
          %556 = dma.vmem_to_hbm [thread:$0]  %s552, 128, %s554, %s538
        $region40: #{tpu_custom_call.1} parent=31 // pred_fallthru
          _
      $region32: #{tpu_custom_call.1} parent=5 // pred_fallthru
        _
      %p557 = scmp.le.s32.totalorder 2, %s15
      // Predicated region
      $region41: #{tpu_custom_call.1} parent=5 // pred_check
        %p558 = pneg %p557
      $region42: #{tpu_custom_call.1} parent=5 // pred_check_branch
        %560 = sbr.rel (%p558) target = $region44
      $region43: #{tpu_custom_call.1} parent=5 // pred_region
        %s561 = ssub.s32 %s15, 2
        // Predicated region
        $region45: #{tpu_custom_call.1} parent=43 // pred_check
          %p562 = pneg %p112
        $region46: #{tpu_custom_call.1} parent=43 // pred_check_branch
          %564 = sbr.rel (%p562) target = $region48
        $region47: #{tpu_custom_call.1} parent=43 // pred_region
          %s565 = sand.u32 %s97, 1
          %s566 = scalar_lea.sflag [#allocation5], %s565
          %s567 = sand.u32 %s97, 1
          %s568 = smul.addr %s567, 8
          %s569 = scalar_lea.vmem [#allocation6], %s568
          %571 = dma.done %s566, 128
        $region48: #{tpu_custom_call.1} parent=43 // pred_fallthru
          _
      $region44: #{tpu_custom_call.1} parent=5 // pred_fallthru
        _
    $region6: #{tpu_custom_call.1} parent=1 // loop_footer
      %s19 = sadd.s32 1, %s15
    $region7: #{tpu_custom_call.1} parent=1 // loop_footer_branch
      %14 = sbr.rel target = $region3
    $region8: #{tpu_custom_call.1} parent=1 // loop_exit
      _
    %572 = vsyncpa [#allocation4], 1
    %s573 = scalar_lea.sflag [#allocation4], 1
    %574 = vsyncpa %s573, 1
    %575 = vsyncpa [#allocation5], 1
    %s576 = scalar_lea.sflag [#allocation5], 1
    %577 = vsyncpa %s576, 1

</llo_original>
